<compile_context>
chip_gen: v7x
topology: tpu7x:2x2x1
jax: 0.10.0
libtpu: 0.0.40
codegen_flags: <defaults>
</compile_context>

<pallas_src>
import functools

import jax
import jax.numpy as jnp
from jax.experimental import pallas as pl
from jax.experimental.pallas import tpu as pltpu

LANES = 128
# 8192 rows x 128 lanes x 4 B (f32 compute footprint) = 4 MiB per input block.
BLOCK_ROWS = 8192
VMEM_LIMIT_BYTES = 48 * 1024 * 1024


def _charbonnier_kernel(x_ref, y_ref, out_ref, *, eps2, rows_valid_last,
                        has_partial):
    i = pl.program_id(0)
    nb = pl.num_programs(0)

    @pl.when(i == 0)
    def _init():
        out_ref[...] = jnp.zeros_like(out_ref)

    x = x_ref[...].astype(jnp.float32)
    y = y_ref[...].astype(jnp.float32)
    d = x - y
    val = jnp.sqrt(d * d + jnp.float32(eps2))

    if not has_partial:
        # Every block is fully valid: unmasked accumulate (hot path).
        out_ref[...] += jnp.sum(val, axis=0, keepdims=True)
    else:
        # Only the single edge block pays for the mask; full blocks stay clean.
        @pl.when(i < nb - 1)
        def _full():
            out_ref[...] += jnp.sum(val, axis=0, keepdims=True)

        @pl.when(i == nb - 1)
        def _edge():
            ri = jax.lax.broadcasted_iota(jnp.int32, val.shape, 0)
            masked = jnp.where(ri < rows_valid_last, val, jnp.float32(0.0))
            out_ref[...] += jnp.sum(masked, axis=0, keepdims=True)


def _charbonnier_sum_jax(x, y, eps2):
    d = x.astype(jnp.float32) - y.astype(jnp.float32)
    return jnp.sum(jnp.sqrt(d * d + jnp.float32(eps2)))


def charbonnier_loss(x, y, eps=1e-3, *, min_pallas_elems=131072):
    assert x.shape == y.shape, (x.shape, y.shape)
    n = x.size
    eps2 = float(eps) * float(eps)

    xf = jnp.reshape(x, (-1,))
    yf = jnp.reshape(y, (-1,))

    rows = n // LANES            # whole 128-lane rows handled by the kernel
    tail = n - rows * LANES      # < 128 trailing elements handled in plain JAX

    if rows == 0 or n < min_pallas_elems:
        # Tiny input: kernel launch + grid-step overhead dominates; XLA fuses
        # this elementwise reduce just fine.
        return _charbonnier_sum_jax(xf, yf, eps2) / jnp.float32(n)

    # Free view when n % 128 == 0 (no jnp.pad / full-array copy).  The prefix
    # slice for n % 128 != 0 is the rare case and is accepted as a copy.
    x_main = xf if tail == 0 else xf[: rows * LANES]
    y_main = yf if tail == 0 else yf[: rows * LANES]
    x2 = x_main.reshape(rows, LANES)
    y2 = y_main.reshape(rows, LANES)

    if rows <= BLOCK_ROWS:
        block_rows = rows        # single block == full array dims (always legal)
        has_partial = False
        rows_valid_last = rows
    else:
        block_rows = BLOCK_ROWS
        nb_tmp = pl.cdiv(rows, block_rows)
        rows_valid_last = rows - (nb_tmp - 1) * block_rows
        has_partial = rows_valid_last != block_rows

    nb = pl.cdiv(rows, block_rows)

    kernel = functools.partial(
        _charbonnier_kernel,
        eps2=eps2,
        rows_valid_last=rows_valid_last,
        has_partial=has_partial,
    )

    partials = pl.pallas_call(
        kernel,
        out_shape=jax.ShapeDtypeStruct((1, LANES), jnp.float32),
        grid_spec=pltpu.PrefetchScalarGridSpec(
            num_scalar_prefetch=0,
            grid=(nb,),
            in_specs=[
                pl.BlockSpec((block_rows, LANES), lambda i: (i, 0)),
                pl.BlockSpec((block_rows, LANES), lambda i: (i, 0)),
            ],
            out_specs=pl.BlockSpec((1, LANES), lambda i: (0, 0)),
        ),
        compiler_params=pltpu.CompilerParams(
            dimension_semantics=("arbitrary",),
            vmem_limit_bytes=VMEM_LIMIT_BYTES,
        ),
    )(x2, y2)

    total = jnp.sum(partials)
    if tail:
        total = total + _charbonnier_sum_jax(
            xf[rows * LANES:], yf[rows * LANES:], eps2)
    return total / jnp.float32(n)


if __name__ == "__main__":
    eps = 1e-3

    def ref_loss(a, b):
        d = a.astype(jnp.float32) - b.astype(jnp.float32)
        return jnp.mean(jnp.sqrt(d * d + jnp.float32(eps * eps)))

    key = jax.random.PRNGKey(0)
    k0, k1, k2, k3, k4, k5 = jax.random.split(key, 6)

    # 1) Small shape consistent with the module (forced through the kernel).
    x = jax.random.normal(k0, (2, 4, 16, 16), dtype=jnp.float32)
    y = jax.random.normal(k1, (2, 4, 16, 16), dtype=jnp.float32)
    loss = charbonnier_loss(x, y, eps, min_pallas_elems=0)
    jax.block_until_ready(loss)
    assert jnp.allclose(loss, ref_loss(x, y), rtol=1e-5, atol=1e-6), (
        loss, ref_loss(x, y))

    # 2) bf16 inputs (in-kernel f32 upcast).
    xb = jax.random.normal(k2, (2, 4, 16, 16), dtype=jnp.bfloat16)
    yb = jax.random.normal(k3, (2, 4, 16, 16), dtype=jnp.bfloat16)
    loss_b = charbonnier_loss(xb, yb, eps, min_pallas_elems=0)
    jax.block_until_ready(loss_b)
    assert jnp.allclose(loss_b, ref_loss(xb, yb), rtol=1e-4, atol=1e-6), (
        loss_b, ref_loss(xb, yb))

    # 3) Ragged size exercising the masked partial edge block and the <128-elem
    #    plain-JAX tail (n = 1,083,600 -> rows = 8465, tail = 80).
    xr = jax.random.normal(k4, (4, 3, 300, 301), dtype=jnp.float32)
    yr = jax.random.normal(k5, (4, 3, 300, 301), dtype=jnp.float32)
    loss_r = charbonnier_loss(xr, yr, eps)
    jax.block_until_ready(loss_r)
    assert jnp.allclose(loss_r, ref_loss(xr, yr), rtol=1e-4, atol=1e-6), (
        loss_r, ref_loss(xr, yr))

    print("KERNEL_OK")
</pallas_src>

<mosaic_0001>
module attributes {stable_mosaic.version = 11 : i64} {
  func.func @_charbonnier_kernel(%arg0: i32, %arg1: memref<16x128xf32, #tpu.memory_space<vmem>>, %arg2: memref<16x128xf32, #tpu.memory_space<vmem>>, %arg3: memref<1x128xf32, #tpu.memory_space<vmem>>) attributes {dimension_semantics = [#tpu.dimension_semantics<arbitrary>], iteration_bounds = array<i64: 1>, scalar_prefetch = 0 : i64, scratch_operands = 0 : i64, tpu.core_type = #tpu.core_type<tc>, window_params = [{transform_indices = @transform_0, window_bounds = array<i64: 16, 128>}, {transform_indices = @transform_1, window_bounds = array<i64: 16, 128>}, {pipeline_mode = #tpu.pipeline_mode<synchronous>, transform_indices = @transform_2, window_bounds = array<i64: 1, 128>}]} {
    %c0_i32 = arith.constant 0 : i32
    %0 = arith.cmpi eq, %arg0, %c0_i32 : i32
    %1 = arith.extui %0 : i1 to i32
    %c0_i32_0 = arith.constant 0 : i32
    %2 = arith.cmpi ne, %1, %c0_i32_0 : i32
    scf.if %2 {
      %cst_9 = arith.constant 0.000000e+00 : f32
      %15 = vector.broadcast %cst_9 : f32 to vector<1x128xf32>
      %c0_10 = arith.constant 0 : index
      %c0_11 = arith.constant 0 : index
      %16 = vector.load %arg3[%c0_10, %c0_11] : memref<1x128xf32, #tpu.memory_space<vmem>>, vector<1x128xf32>
      tpu.vector_store %arg3[%c0_10, %c0_11], %15 {strides = array<i32>} : memref<1x128xf32, #tpu.memory_space<vmem>>, vector<1x128xf32>,
    } else {
    }
    %c0 = arith.constant 0 : index
    %c0_1 = arith.constant 0 : index
    %3 = vector.load %arg1[%c0, %c0_1] : memref<16x128xf32, #tpu.memory_space<vmem>>, vector<16x128xf32>
    %c0_2 = arith.constant 0 : index
    %c0_3 = arith.constant 0 : index
    %4 = vector.load %arg2[%c0_2, %c0_3] : memref<16x128xf32, #tpu.memory_space<vmem>>, vector<16x128xf32>
    %5 = arith.subf %3, %4 : vector<16x128xf32>
    %6 = arith.mulf %5, %5 : vector<16x128xf32>
    %cst = arith.constant 9.99999997E-7 : f32
    %7 = vector.broadcast %cst : f32 to vector<16x128xf32>
    %8 = arith.addf %6, %7 : vector<16x128xf32>
    %9 = math.sqrt %8 : vector<16x128xf32>
    %c0_4 = arith.constant 0 : index
    %c0_5 = arith.constant 0 : index
    %10 = vector.load %arg3[%c0_4, %c0_5] : memref<1x128xf32, #tpu.memory_space<vmem>>, vector<1x128xf32>
    %cst_6 = arith.constant dense<0.000000e+00> : vector<128xf32>
    %11 = vector.multi_reduction <add>, %9, %cst_6 [0] : vector<16x128xf32> to vector<128xf32>
    %12 = vector.shape_cast %11 : vector<128xf32> to vector<1x128xf32>
    %13 = arith.addf %10, %12 : vector<1x128xf32>
    %c0_7 = arith.constant 0 : index
    %c0_8 = arith.constant 0 : index
    %14 = vector.load %arg3[%c0_7, %c0_8] : memref<1x128xf32, #tpu.memory_space<vmem>>, vector<1x128xf32>
    tpu.vector_store %arg3[%c0_7, %c0_8], %13 {strides = array<i32>} : memref<1x128xf32, #tpu.memory_space<vmem>>, vector<1x128xf32>,
    return
  }
  func.func @transform_0(%arg0: i32) -> (i32, i32) {
    %c0_i32 = arith.constant 0 : i32
    %c0_i32_0 = arith.constant 0 : i32
    return %arg0, %c0_i32 : i32, i32
  }
  func.func @transform_1(%arg0: i32) -> (i32, i32) {
    %c0_i32 = arith.constant 0 : i32
    %c0_i32_0 = arith.constant 0 : i32
    return %arg0, %c0_i32 : i32, i32
  }
  func.func @transform_2(%arg0: i32) -> (i32, i32) {
    %c0_i32 = arith.constant 0 : i32
    %c0_i32_0 = arith.constant 0 : i32
    %c0_i32_1 = arith.constant 0 : i32
    return %c0_i32, %c0_i32_0 : i32, i32
  }
}

</mosaic_0001>

<llo_original>
// kernel: tpu_custom_call.1
$region0: #{tpu_custom_call.1}
  #allocation0 [shape = 'u32[]', space=smem, size = 0x4, offset = 0x4, fixed_abs, tag = 'smem constant byte address 0x4 - core index']
  #allocation1 [shape = 'u32[144,128]{1,0:T(1,128)}', space=vmem, size = 0x12000, scoped, tag = 'internal scratch']
  %s0 = inlined_call_operand.hbm [shape: f32[16,128], index: 0, kind: input, shape index: {}]
  %s1 = inlined_call_operand.hbm [shape: f32[16,128], index: 1, kind: input, shape index: {}]
  %s2 = inlined_call_operand.hbm [shape: f32[1,128], index: 2, kind: output, shape index: {}]
  %s3 = sld [smem:[#allocation0]]
  $region30: #{tpu_custom_call.1} parent=0
    _
  %s5 = ssub.s32 1, %s3
  %s6 = scalar_select 0, %s5, %s3
  $region1: #{tpu_custom_call.1} parent=0
    #allocation2 [shape = 'u8[8192]{0}', space=vmem, size = 0x2000, scoped, tag = 'input window, operand 0, single buffered']
    #allocation3 [shape = 's32[1]{0}', space=sflag, size = 0x4, scoped, tag = 'scoped memory for tpu_custom_call.1']
    #allocation4 [shape = 's32[1]{0}', space=sflag, size = 0x4, scoped, tag = 'scoped memory for tpu_custom_call.1']
    #allocation5 [shape = 'u8[8192]{0}', space=vmem, size = 0x2000, scoped, tag = 'input window, operand 1, single buffered']
    #allocation6 [shape = 's32[1]{0}', space=sflag, size = 0x4, scoped, tag = 'scoped memory for tpu_custom_call.1']
    #allocation7 [shape = 'u8[512]{0}', space=vmem, size = 0x400, scoped, tag = 'output window, operand 0, single buffered']
    %7 = vsyncpa [#allocation3], 0
    %8 = vsyncpa [#allocation6], 0
    %9 = vsyncpa [#allocation4], 0
    // Predicated region
    $region2: #{tpu_custom_call.1} parent=1 // pred_check
      _
    $region3: #{tpu_custom_call.1} parent=1 // pred_check_branch
      %11 = sbr.rel (0) target = $region5
    $region4: #{tpu_custom_call.1} parent=1 // pred_region
      %s13 = ssub.s32 256, 256
      %14 = vsyncadd [#allocation3], %s13
      %s15 = sshll.u32 [#allocation2], 4
      %s16 = int_to_ptr.vmem [resolvable:$true] %s15
      %21 = dma.hbm_to_vmem [thread:$0]  %s0, 256, %s16, [#allocation3], 128, 128, 8
    $region5: #{tpu_custom_call.1} parent=1 // pred_fallthru
      _
    // Predicated region
    $region6: #{tpu_custom_call.1} parent=1 // pred_check
      _
    $region7: #{tpu_custom_call.1} parent=1 // pred_check_branch
      %23 = sbr.rel (0) target = $region9
    $region8: #{tpu_custom_call.1} parent=1 // pred_region
      %s25 = ssub.s32 256, 256
      %26 = vsyncadd [#allocation6], %s25
      %s27 = sshll.u32 [#allocation5], 4
      %s28 = int_to_ptr.vmem [resolvable:$true] %s27
      %33 = dma.hbm_to_vmem [thread:$0]  %s1, 256, %s28, [#allocation6], 128, 128, 8
    $region9: #{tpu_custom_call.1} parent=1 // pred_fallthru
      _
    // Predicated region
    $region10: #{tpu_custom_call.1} parent=1 // pred_check
      _
    $region11: #{tpu_custom_call.1} parent=1 // pred_check_branch
      %35 = sbr.rel (0) target = $region13
    $region12: #{tpu_custom_call.1} parent=1 // pred_region
      %36 = dma.done [#allocation3], 256
    $region13: #{tpu_custom_call.1} parent=1 // pred_fallthru
      _
    // Predicated region
    $region14: #{tpu_custom_call.1} parent=1 // pred_check
      _
    $region15: #{tpu_custom_call.1} parent=1 // pred_check_branch
      %38 = sbr.rel (0) target = $region17
    $region16: #{tpu_custom_call.1} parent=1 // pred_region
      %39 = dma.done [#allocation6], 256
    $region17: #{tpu_custom_call.1} parent=1 // pred_fallthru
      _
    %p40 = scmp.eq.s32.totalorder 0, 0
    // Predicated region
    $region18: #{tpu_custom_call.1} parent=1 // pred_check
      %p41 = pneg %p40
    $region19: #{tpu_custom_call.1} parent=1 // pred_check_branch
      %43 = sbr.rel (%p41) target = $region21
    $region20: #{tpu_custom_call.1} parent=1 // pred_region
      %44 = vst [vmem:[#allocation7] sm:$0x1] 0.0
    $region21: #{tpu_custom_call.1} parent=1 // pred_fallthru
      _
    %v45 = vld [vmem:[#allocation2] sm:$0xff]
    %v46 = vld [vmem:[#allocation2 + $0x8] sm:$0xff]
    %v47 = vld [vmem:[#allocation5] sm:$0xff]
    %v48 = vld [vmem:[#allocation5 + $0x8] sm:$0xff]
    %v49 = vsub.f32 %v45, %v47
    %v50 = vsub.f32 %v46, %v48
    %v51 = vmul.f32 %v49, %v49
    %v52 = vmul.f32 %v50, %v50
    %v53 = vadd.f32 %v51, 1e-06
    %v54 = vadd.f32 %v52, 1e-06
    %v55 = vrsqrt.pop %v53
    %v56 = vmul.f32 %v53, %v55
    %vm57 = vcmp.eq.f32.partialorder %v53, inf
    %v58 = vsel %vm57, %v53, %v56
    %vm59 = vcmp.eq.f32.partialorder %v53, 0.0
    %v60 = vand.u32 %v53, 2147483648
    %v61 = vsel %vm59, %v60, %v58
    %v62 = vrsqrt.pop %v54
    %v63 = vmul.f32 %v54, %v62
    %vm64 = vcmp.eq.f32.partialorder %v54, inf
    %v65 = vsel %vm64, %v54, %v63
    %vm66 = vcmp.eq.f32.partialorder %v54, 0.0
    %v67 = vand.u32 %v54, 2147483648
    %v68 = vsel %vm66, %v67, %v65
    %v69 = vld [vmem:[#allocation7] sm:$0x1]
    %v70 = vadd.f32 %v61, %v68
    %v71 = vrot.slane %v70, 4
    %v72 = vadd.f32 %v70, %v71
    %v73 = vrot.slane %v72, 2
    %v74 = vadd.f32 %v72, %v73
    %v75 = vrot.slane %v74, 1
    %v76 = vadd.f32 %v74, %v75
    %v77 = vadd.f32 %v69, %v76
    %78 = vst [vmem:[#allocation7] sm:$0x1] %v77
    // Predicated region
    $region22: #{tpu_custom_call.1} parent=1 // pred_check
      _
    $region23: #{tpu_custom_call.1} parent=1 // pred_check_branch
      %80 = sbr.rel (0) target = $region25
    $region24: #{tpu_custom_call.1} parent=1 // pred_region
      %s82 = ssub.s32 16, 16
      %83 = vsyncadd [#allocation4], %s82
      %s85 = sshll.u32 [#allocation7], 4
      %s86 = int_to_ptr.vmem [resolvable:$true] %s85
      %88 = dma.vmem_to_hbm [thread:$0]  %s86, 16, %s2, [#allocation4]
    $region25: #{tpu_custom_call.1} parent=1 // pred_fallthru
      _
    // Predicated region
    $region26: #{tpu_custom_call.1} parent=1 // pred_check
      _
    $region27: #{tpu_custom_call.1} parent=1 // pred_check_branch
      %90 = sbr.rel (0) target = $region29
    $region28: #{tpu_custom_call.1} parent=1 // pred_region
      %91 = dma.done [#allocation4], 16
    $region29: #{tpu_custom_call.1} parent=1 // pred_fallthru
      _
    %92 = vsyncpa [#allocation3], 1
    %93 = vsyncpa [#allocation6], 1
    %94 = vsyncpa [#allocation4], 1

</llo_original>
